<compile_context>
chip_gen: v5e
topology: v5e:2x2
jax: 0.10.0
libtpu: 0.0.40
codegen_flags: <defaults>
</compile_context>

<pallas_src>
import jax
import jax.numpy as jnp
from jax.experimental import pallas as pl
from jax.experimental.pallas import tpu as pltpu


def _round_up(x, m):
    return ((x + m - 1) // m) * m


def _pick_tile(dim, max_tile, align):
    """Return (tile, padded_dim): whole dim if it fits, else an aligned divisor."""
    if dim <= max_tile:
        return dim, dim                       # single tile, no padding at all
    padded = _round_up(dim, align)
    start = max_tile - (max_tile % align)
    for t in range(start, align - 1, -align):
        if padded % t == 0:
            return t, padded
    return align, padded


def _make_kernel(has_bias, multi_k):
    if multi_k:
        def kernel(*refs):
            if has_bias:
                x_ref, wt_ref, b_ref, o_ref, acc_ref = refs
            else:
                x_ref, wt_ref, o_ref, acc_ref = refs
            k = pl.program_id(2)

            @pl.when(k == 0)
            def _():
                acc_ref[...] = jnp.zeros_like(acc_ref)

            acc_ref[...] += jnp.dot(
                x_ref[...], wt_ref[...], preferred_element_type=jnp.float32
            )

            @pl.when(k == pl.num_programs(2) - 1)
            def _():
                acc = acc_ref[...]
                if has_bias:
                    acc = acc + b_ref[...].astype(jnp.float32)
                o_ref[...] = acc.astype(o_ref.dtype)
    else:
        def kernel(*refs):
            if has_bias:
                x_ref, wt_ref, b_ref, o_ref = refs
            else:
                x_ref, wt_ref, o_ref = refs
            acc = jnp.dot(
                x_ref[...], wt_ref[...], preferred_element_type=jnp.float32
            )
            if has_bias:
                acc = acc + b_ref[...].astype(jnp.float32)
            o_ref[...] = acc.astype(o_ref.dtype)
    return kernel


def embedding_inverse(embedded, weight, bias=None, *, tm=None, tn=None, tk=None):
    """out = embedded @ weight.T + bias   (F.linear semantics)."""
    *lead, K = embedded.shape
    N, K_w = weight.shape
    assert K == K_w, "embedding_dim mismatch"

    M = 1
    for d in lead:
        M *= d
    dtype = embedded.dtype
    has_bias = bias is not None

    # ---- tile / padding selection ----
    if tm is None:
        tm, Mp = _pick_tile(M, 256, 8)
    else:
        Mp = _round_up(M, tm)
    if tn is None:
        tn, Np = _pick_tile(N, 512, 128)
    else:
        Np = _round_up(N, tn)
    if tk is None:
        tk, Kp = _pick_tile(K, 1024, 128)
    else:
        Kp = _round_up(K, tk)
    multi_k = Kp > tk

    # ---- wrapper-side layout prep (one-time, HBM side) ----
    x2d = embedded.reshape(M, K)
    if (Mp, Kp) != (M, K):
        x2d = jnp.pad(x2d, ((0, Mp - M), (0, Kp - K)))

    wt = weight.T                         # (K, N): contraction on sublanes
    if wt.dtype != dtype:
        wt = wt.astype(dtype)
    if (Kp, Np) != (K, N):
        wt = jnp.pad(wt, ((0, Kp - K), (0, Np - N)))

    args = [x2d, wt]
    if has_bias:
        b2d = bias.reshape(1, N).astype(dtype)
        if Np != N:
            b2d = jnp.pad(b2d, ((0, 0), (0, Np - N)))
        args.append(b2d)

    # ---- grid spec ----
    if multi_k:
        grid = (Mp // tm, Np // tn, Kp // tk)
        in_specs = [
            pl.BlockSpec((tm, tk), lambda m, n, k: (m, k)),   # activations
            pl.BlockSpec((tk, tn), lambda m, n, k: (k, n)),   # weight^T
        ]
        if has_bias:
            in_specs.append(pl.BlockSpec((1, tn), lambda m, n, k: (0, n)))
        out_specs = pl.BlockSpec((tm, tn), lambda m, n, k: (m, n))
        scratch_shapes = (pltpu.VMEM((tm, tn), jnp.float32),)
        dim_sem = ("parallel", "parallel", "arbitrary")
    else:
        grid = (Mp // tm, Np // tn)
        in_specs = [
            pl.BlockSpec((tm, tk), lambda m, n: (m, 0)),      # activations
            pl.BlockSpec((tk, tn), lambda m, n: (0, n)),      # weight^T
        ]
        if has_bias:
            in_specs.append(pl.BlockSpec((1, tn), lambda m, n: (0, n)))
        out_specs = pl.BlockSpec((tm, tn), lambda m, n: (m, n))
        scratch_shapes = ()
        dim_sem = ("parallel", "parallel")

    itemsize = jnp.dtype(dtype).itemsize
    tile_bytes = (
        2 * (tm * tk + tk * tn + tm * tn + (tn if has_bias else 0)) * itemsize
        + (tm * tn * 4 if multi_k else 0)
    )
    vmem_limit = int(min(max(2 * tile_bytes, 16 << 20), 48 << 20))

    cost = pl.CostEstimate(
        flops=2 * M * N * K,
        transcendentals=0,
        bytes_accessed=(M * K + K * N + M * N + (N if has_bias else 0)) * itemsize,
    )

    out = pl.pallas_call(
        _make_kernel(has_bias, multi_k),
        out_shape=jax.ShapeDtypeStruct((Mp, Np), dtype),
        grid_spec=pltpu.PrefetchScalarGridSpec(
            num_scalar_prefetch=0,
            grid=grid,
            in_specs=in_specs,
            out_specs=out_specs,
            scratch_shapes=scratch_shapes,
        ),
        compiler_params=pltpu.CompilerParams(
            dimension_semantics=dim_sem,
            vmem_limit_bytes=vmem_limit,
        ),
        cost_estimate=cost,
    )(*args)

    if (Mp, Np) != (M, N):
        out = out[:M, :N]
    return out.reshape(*lead, N)


if __name__ == "__main__":
    key = jax.random.PRNGKey(0)
    k_emb, k_w, k_emb2, k_w2 = jax.random.split(key, 4)

    # Small shapes consistent with the module: batch=2, seq=8, embedding_dim=32,
    # num_embeddings=256.
    B, S, D = 2, 8, 32
    num_embeddings = 256

    embedded = jax.random.normal(k_emb, (B, S, D), dtype=jnp.float32)
    # nn.Embedding default init ~ N(0, 1); deterministic synthetic weights here.
    weight = jax.random.normal(k_w, (num_embeddings, D), dtype=jnp.float32)
    # EmbeddingInverse initializes bias to zeros.
    bias = jnp.zeros((num_embeddings,), dtype=jnp.float32)

    # 1) bias path (single-K-step kernel)
    out = jax.block_until_ready(embedding_inverse(embedded, weight, bias))
    ref = embedded @ weight.T + bias
    assert out.shape == (B, S, num_embeddings)
    assert jnp.allclose(out, ref, atol=1e-4, rtol=1e-4)

    # 2) bias=False path (module built with bias=False)
    out_nb = jax.block_until_ready(embedding_inverse(embedded, weight, None))
    assert jnp.allclose(out_nb, embedded @ weight.T, atol=1e-4, rtol=1e-4)

    # 3) multi-K-step reduction path (forced small tk), bias path
    D2, N2 = 256, 384
    embedded2 = jax.random.normal(k_emb2, (B, S, D2), dtype=jnp.float32)
    weight2 = jax.random.normal(k_w2, (N2, D2), dtype=jnp.float32)
    bias2 = jnp.zeros((N2,), dtype=jnp.float32)
    out2 = jax.block_until_ready(embedding_inverse(embedded2, weight2, bias2, tk=128))
    assert jnp.allclose(out2, embedded2 @ weight2.T + bias2, atol=1e-3, rtol=1e-4)

    print("KERNEL_OK")
</pallas_src>

<mosaic_0001>
module attributes {stable_mosaic.version = 11 : i64} {
  func.func @kernel(%arg0: i32, %arg1: i32, %arg2: memref<16x32xf32, #tpu.memory_space<vmem>>, %arg3: memref<32x256xf32, #tpu.memory_space<vmem>>, %arg4: memref<1x256xf32, #tpu.memory_space<vmem>>, %arg5: memref<16x256xf32, #tpu.memory_space<vmem>>) attributes {dimension_semantics = [#tpu.dimension_semantics<parallel>, #tpu.dimension_semantics<parallel>], iteration_bounds = array<i64: 1, 1>, scalar_prefetch = 0 : i64, scratch_operands = 0 : i64, tpu.core_type = #tpu.core_type<tc>, window_params = [{transform_indices = @transform_0, window_bounds = array<i64: 16, 32>}, {transform_indices = @transform_1, window_bounds = array<i64: 32, 256>}, {transform_indices = @transform_2, window_bounds = array<i64: 1, 256>}, {transform_indices = @transform_3, window_bounds = array<i64: 16, 256>}]} {
    %c0 = arith.constant 0 : index
    %c0_0 = arith.constant 0 : index
    %0 = vector.load %arg2[%c0, %c0_0] : memref<16x32xf32, #tpu.memory_space<vmem>>, vector<16x32xf32>
    %c0_1 = arith.constant 0 : index
    %c0_2 = arith.constant 0 : index
    %1 = vector.load %arg3[%c0_1, %c0_2] : memref<32x256xf32, #tpu.memory_space<vmem>>, vector<32x256xf32>
    %cst = arith.constant dense<0.000000e+00> : vector<16x256xf32>
    %2 = tpu.matmul %0, %1, %cst {dimension_numbers = #tpu.dot_dimension_numbers<[1], [0], [0], [1], [0, 0, 1, 1], [], []>} : vector<16x32xf32>, vector<32x256xf32>, vector<16x256xf32> -> vector<16x256xf32>
    %c0_3 = arith.constant 0 : index
    %c0_4 = arith.constant 0 : index
    %3 = vector.load %arg4[%c0_3, %c0_4] : memref<1x256xf32, #tpu.memory_space<vmem>>, vector<1x256xf32>
    %4 = vector.broadcast %3 : vector<1x256xf32> to vector<16x256xf32>
    %5 = arith.addf %2, %4 : vector<16x256xf32>
    %c0_5 = arith.constant 0 : index
    %c0_6 = arith.constant 0 : index
    %6 = vector.load %arg5[%c0_5, %c0_6] : memref<16x256xf32, #tpu.memory_space<vmem>>, vector<16x256xf32>
    tpu.vector_store %arg5[%c0_5, %c0_6], %5 {strides = array<i32>} : memref<16x256xf32, #tpu.memory_space<vmem>>, vector<16x256xf32>,
    return
  }
  func.func @transform_0(%arg0: i32, %arg1: i32) -> (i32, i32) {
    %c0_i32 = arith.constant 0 : i32
    %c0_i32_0 = arith.constant 0 : i32
    return %arg0, %c0_i32 : i32, i32
  }
  func.func @transform_1(%arg0: i32, %arg1: i32) -> (i32, i32) {
    %c0_i32 = arith.constant 0 : i32
    %c0_i32_0 = arith.constant 0 : i32
    return %c0_i32, %arg1 : i32, i32
  }
  func.func @transform_2(%arg0: i32, %arg1: i32) -> (i32, i32) {
    %c0_i32 = arith.constant 0 : i32
    %c0_i32_0 = arith.constant 0 : i32
    return %c0_i32, %arg1 : i32, i32
  }
  func.func @transform_3(%arg0: i32, %arg1: i32) -> (i32, i32) {
    %c0_i32 = arith.constant 0 : i32
    return %arg0, %arg1 : i32, i32
  }
}

</mosaic_0001>

<llo_original>
// kernel: tpu_custom_call.1
$region0: #{tpu_custom_call.1}
  #allocation0 [shape = 'u32[]', space=smem, size = 0x4, offset = 0x4, fixed_abs, tag = 'smem constant byte address 0x4 - core index']
  #allocation1 [shape = 'u32[72,128]{1,0:T(1,128)}', space=vmem, size = 0x9000, scoped, tag = 'internal scratch']
  %s0 = inlined_call_operand.hbm [shape: f32[16,32], index: 0, kind: input, shape index: {}]
  %s1 = inlined_call_operand.hbm [shape: f32[32,256], index: 1, kind: input, shape index: {}]
  %s2 = inlined_call_operand.hbm [shape: f32[1,256], index: 2, kind: input, shape index: {}]
  %s3 = inlined_call_operand.hbm [shape: f32[16,256], index: 3, kind: output, shape index: {}]
  %s4 = sld [smem:[#allocation0]]
  $region34: #{tpu_custom_call.1} parent=0
    _
  %s6 = ssub.s32 1, %s4
  %s7 = scalar_select 0, %s6, %s4
  $region1: #{tpu_custom_call.1} parent=0
    #allocation2 [shape = 'u8[8192]{0}', space=vmem, size = 0x2000, scoped, tag = 'input window, operand 0, single buffered']
    #allocation3 [shape = 's32[1]{0}', space=sflag, size = 0x4, scoped, tag = 'scoped memory for tpu_custom_call.1']
    #allocation4 [shape = 's32[1]{0}', space=sflag, size = 0x4, scoped, tag = 'scoped memory for tpu_custom_call.1']
    #allocation5 [shape = 'u8[32768]{0}', space=vmem, size = 0x8000, scoped, tag = 'input window, operand 1, single buffered']
    #allocation6 [shape = 's32[1]{0}', space=sflag, size = 0x4, scoped, tag = 'scoped memory for tpu_custom_call.1']
    #allocation7 [shape = 'u8[1024]{0}', space=vmem, size = 0x400, scoped, tag = 'input window, operand 2, single buffered']
    #allocation8 [shape = 'u8[16384]{0}', space=vmem, size = 0x4000, scoped, tag = 'output window, operand 0, single buffered']
    %8 = vsyncpa [#allocation3], 0
    %9 = vsyncpa [#allocation6], 0
    %10 = vsyncpa [#allocation4], 0
    // Predicated region
    $region2: #{tpu_custom_call.1} parent=1 // pred_check
      _
    $region3: #{tpu_custom_call.1} parent=1 // pred_check_branch
      %12 = sbr.rel (0) target = $region5
    $region4: #{tpu_custom_call.1} parent=1 // pred_region
      %14 = vsyncadd [#allocation3], 0
      %s15 = sshll.u32 %s0, 4
      %s16 = int_to_ptr.hbm [resolvable:$true] %s15
      %s17 = sshll.u32 [#allocation2], 4
      %s18 = int_to_ptr.vmem [resolvable:$true] %s17
      %23 = dma.hbm_to_vmem [thread:$0]  %s16, 256, %s18, [#allocation3], 128, 128, 8
    $region5: #{tpu_custom_call.1} parent=1 // pred_fallthru
      _
    // Predicated region
    $region6: #{tpu_custom_call.1} parent=1 // pred_check
      _
    $region7: #{tpu_custom_call.1} parent=1 // pred_check_branch
      %25 = sbr.rel (0) target = $region9
    $region8: #{tpu_custom_call.1} parent=1 // pred_region
      %27 = vsyncadd [#allocation6], 0
      %s28 = sshll.u32 %s1, 4
      %s29 = int_to_ptr.hbm [resolvable:$true] %s28
      %s30 = sshll.u32 [#allocation5], 4
      %s31 = int_to_ptr.vmem [resolvable:$true] %s30
      %36 = dma.hbm_to_vmem [thread:$0]  %s29, 1024, %s31, [#allocation6], 256, 256, 16
    $region9: #{tpu_custom_call.1} parent=1 // pred_fallthru
      _
    // Predicated region
    $region10: #{tpu_custom_call.1} parent=1 // pred_check
      _
    $region11: #{tpu_custom_call.1} parent=1 // pred_check_branch
      %38 = sbr.rel (0) target = $region13
    $region12: #{tpu_custom_call.1} parent=1 // pred_region
      %40 = vsyncadd [#allocation6], 0
      %s42 = sshll.u32 %s2, 4
      %s43 = int_to_ptr.hbm [resolvable:$true] %s42
      %s44 = sshll.u32 [#allocation7], 4
      %s45 = int_to_ptr.vmem [resolvable:$true] %s44
      %47 = dma.hbm_to_vmem [thread:$0]  %s43, 32, %s45, [#allocation6]
    $region13: #{tpu_custom_call.1} parent=1 // pred_fallthru
      _
    // Predicated region
    $region14: #{tpu_custom_call.1} parent=1 // pred_check
      _
    $region15: #{tpu_custom_call.1} parent=1 // pred_check_branch
      %49 = sbr.rel (0) target = $region17
    $region16: #{tpu_custom_call.1} parent=1 // pred_region
      %51 = dma.done [#allocation3], 256
    $region17: #{tpu_custom_call.1} parent=1 // pred_fallthru
      _
    // Predicated region
    $region18: #{tpu_custom_call.1} parent=1 // pred_check
      _
    $region19: #{tpu_custom_call.1} parent=1 // pred_check_branch
      %53 = sbr.rel (0) target = $region21
    $region20: #{tpu_custom_call.1} parent=1 // pred_region
      %55 = dma.done [#allocation6], 1024
    $region21: #{tpu_custom_call.1} parent=1 // pred_fallthru
      _
    // Predicated region
    $region22: #{tpu_custom_call.1} parent=1 // pred_check
      _
    $region23: #{tpu_custom_call.1} parent=1 // pred_check_branch
      %57 = sbr.rel (0) target = $region25
    $region24: #{tpu_custom_call.1} parent=1 // pred_region
      %59 = dma.done [#allocation6], 32
    $region25: #{tpu_custom_call.1} parent=1 // pred_fallthru
      _
    %v60 = vld [vmem:[#allocation2] sm:$0xff]
    %v61 = vld [vmem:[#allocation2 + $0x8] sm:$0xff]
    %v62 = vld [vmem:[#allocation5] sm:$0xff]
    %v63 = vld [vmem:[#allocation5 + $0x8] sm:$0xff]
    %v64 = vld [vmem:[#allocation5 + $0x10] sm:$0xff]
    %v65 = vld [vmem:[#allocation5 + $0x18] sm:$0xff]
    %v66 = vld [vmem:[#allocation5 + $0x20] sm:$0xff]
    %v67 = vld [vmem:[#allocation5 + $0x28] sm:$0xff]
    %v68 = vld [vmem:[#allocation5 + $0x30] sm:$0xff]
    %v69 = vld [vmem:[#allocation5 + $0x38] sm:$0xff]
    %v70 = vld [vmem:[#allocation7] sm:$0x3]
    %v72 = vperm.slane %v70, 0
    %v73 = vperm.slane %v70, 1
    %vm76 = vcmask 261120
    %v78 = vsel %vm76, %v60, 0
    %v81 = vsel %vm76, %v61, 0
    %83 = vmatpush.msra.mxu0 0.0
    %84 = vmatpush.msra.mxu0 0.0
    %85 = vmatpush.msra.mxu0 0.0
    %86 = vmatpush.msra.mxu0 0.0
    %87 = vmatpush.msra.mxu0 0.0
    %88 = vmatpush.msra.mxu0 0.0
    %89 = vmatpush.msra.mxu0 0.0
    %90 = vmatpush.msra.mxu0 0.0
    %91 = vmatpush.msra.mxu0 0.0
    %92 = vmatpush.msra.mxu0 0.0
    %93 = vmatpush.msra.mxu0 0.0
    %94 = vmatpush.msra.mxu0 0.0
    %95 = vmatpush.msra.mxu0 %v68
    %96 = vmatpush.msra.mxu0 %v66
    %97 = vmatpush.msra.mxu0 %v64
    %98 = vmatpush.msra.mxu0 %v62
    %99 = vmatmul.f32.gmra.mxu0 %v78
    %v100 = vpop.f32.mrf.mxu0
    %v101 = vadd.f32 %v72, %v100
    %102 = vmatmul.f32.gmra.mxu0 %v81
    %v103 = vpop.f32.mrf.mxu0
    %v104 = vadd.f32 %v72, %v103
    %105 = vdwg.mxu0
    %106 = vmatpush.msra.mxu0 0.0
    %107 = vmatpush.msra.mxu0 0.0
    %108 = vmatpush.msra.mxu0 0.0
    %109 = vmatpush.msra.mxu0 0.0
    %110 = vmatpush.msra.mxu0 0.0
    %111 = vmatpush.msra.mxu0 0.0
    %112 = vmatpush.msra.mxu0 0.0
    %113 = vmatpush.msra.mxu0 0.0
    %114 = vmatpush.msra.mxu0 0.0
    %115 = vmatpush.msra.mxu0 0.0
    %116 = vmatpush.msra.mxu0 0.0
    %117 = vmatpush.msra.mxu0 0.0
    %118 = vmatpush.msra.mxu0 %v69
    %119 = vmatpush.msra.mxu0 %v67
    %120 = vmatpush.msra.mxu0 %v65
    %121 = vmatpush.msra.mxu0 %v63
    %122 = vmatmul.f32.gmra.mxu0 %v78
    %v123 = vpop.f32.mrf.mxu0
    %v124 = vadd.f32 %v73, %v123
    %125 = vmatmul.f32.gmra.mxu0 %v81
    %v126 = vpop.f32.mrf.mxu0
    %v127 = vadd.f32 %v73, %v126
    %128 = vdwg.mxu0
    %129 = vst [vmem:[#allocation8] sm:$0xff] %v101
    %130 = vst [vmem:[#allocation8 + $0x8] sm:$0xff] %v124
    %131 = vst [vmem:[#allocation8 + $0x10] sm:$0xff] %v104
    %132 = vst [vmem:[#allocation8 + $0x18] sm:$0xff] %v127
    // Predicated region
    $region26: #{tpu_custom_call.1} parent=1 // pred_check
      _
    $region27: #{tpu_custom_call.1} parent=1 // pred_check_branch
      %134 = sbr.rel (0) target = $region29
    $region28: #{tpu_custom_call.1} parent=1 // pred_region
      %136 = vsyncadd [#allocation4], 0
      %s137 = sshll.u32 [#allocation8], 4
      %s138 = int_to_ptr.vmem [resolvable:$true] %s137
      %s139 = sshll.u32 %s3, 4
      %s140 = int_to_ptr.hbm [resolvable:$true] %s139
      %145 = dma.vmem_to_hbm [thread:$0]  %s138, 512, %s140, [#allocation4], 256, 256, 16
    $region29: #{tpu_custom_call.1} parent=1 // pred_fallthru
      _
    // Predicated region
    $region30: #{tpu_custom_call.1} parent=1 // pred_check
      _
    $region31: #{tpu_custom_call.1} parent=1 // pred_check_branch
      %147 = sbr.rel (0) target = $region33
    $region32: #{tpu_custom_call.1} parent=1 // pred_region
      %149 = dma.done [#allocation4], 512
    $region33: #{tpu_custom_call.1} parent=1 // pred_fallthru
      _
    %150 = vsyncpa [#allocation3], 1
    %151 = vsyncpa [#allocation6], 1
    %152 = vsyncpa [#allocation4], 1

</llo_original>
